<compile_context>
chip_gen: v7x
topology: tpu7x:2x2x1
jax: 0.10.0
libtpu: 0.0.40
codegen_flags: <defaults>
</compile_context>

<pallas_src>
import functools

import jax
import jax.numpy as jnp
from jax.experimental import pallas as pl
from jax.experimental.pallas import tpu as pltpu

EPS_GMM = 1e-15   # matches torch_geometric GMMConv EPS
EPS_BN = 1e-5     # matches torch.nn.BatchNorm1d default eps


def _round_up(x, m):
    return (x + m - 1) // m * m


def _pad2(a, rows, cols):
    r, c = a.shape
    if r == rows and c == cols:
        return a
    return jnp.pad(a, ((0, rows - r), (0, cols - c)))


# ------------- fused matmul: y = [add +] x @ W [+ b] (+ELU) (+BN stats) -------------

def _mm_kernel(*refs, has_bias, has_add, fuse_elu, compute_stats, n_valid, tm):
    x_ref, w_ref = refs[0], refs[1]
    idx = 2
    b_ref = a_ref = None
    if has_bias:
        b_ref = refs[idx]; idx += 1
    if has_add:
        a_ref = refs[idx]; idx += 1
    o_ref = refs[idx]; idx += 1

    y = jnp.dot(x_ref[...], w_ref[...], preferred_element_type=jnp.float32)
    if has_bias:
        y = y + b_ref[...]
    if has_add:
        y = y + a_ref[...].astype(jnp.float32)
    if fuse_elu:
        y = jnp.where(y > 0, y, jnp.expm1(y))
    o_ref[...] = y.astype(o_ref.dtype)

    if compute_stats:
        sum_ref, sq_ref = refs[idx], refs[idx + 1]

        @pl.when(pl.program_id(0) == 0)
        def _():
            sum_ref[...] = jnp.zeros_like(sum_ref)
            sq_ref[...] = jnp.zeros_like(sq_ref)

        # mask padded rows out of the batch statistics
        row = pl.program_id(0) * tm + jax.lax.broadcasted_iota(jnp.int32, (tm, 1), 0)
        mask = (row < n_valid).astype(jnp.float32)
        ym = y * mask
        sum_ref[...] += jnp.sum(ym, axis=0, keepdims=True)
        sq_ref[...] += jnp.sum(ym * ym, axis=0, keepdims=True)


def matmul_fused(x_pad, w, n_valid, b=None, add_pad=None, fuse_elu=False,
                 compute_stats=False, tm=256):
    """x_pad: (Mp, K) bf16 (rows padded to a multiple of tm); w: (K, N) bf16
    resident in VMEM.  Emits bf16 output; optionally also masked column
    sum / sumsq (f32) of the output over the first n_valid rows (for BN)."""
    Mp, K = x_pad.shape
    Kw, N = w.shape
    assert Kw == K and Mp % tm == 0

    args = [x_pad, w]
    in_specs = [pl.BlockSpec((tm, K), lambda i: (i, 0)),
                pl.BlockSpec((K, N), lambda i: (0, 0))]        # weight resident
    if b is not None:
        args.append(b.reshape(1, N).astype(jnp.float32))
        in_specs.append(pl.BlockSpec((1, N), lambda i: (0, 0)))
    if add_pad is not None:
        args.append(add_pad)
        in_specs.append(pl.BlockSpec((tm, N), lambda i: (i, 0)))

    out_shape = [jax.ShapeDtypeStruct((Mp, N), jnp.bfloat16)]
    out_specs = [pl.BlockSpec((tm, N), lambda i: (i, 0))]
    if compute_stats:
        out_shape.append(jax.ShapeDtypeStruct((1, N), jnp.float32))
        out_shape.append(jax.ShapeDtypeStruct((1, N), jnp.float32))
        out_specs.append(pl.BlockSpec((1, N), lambda i: (0, 0)))
        out_specs.append(pl.BlockSpec((1, N), lambda i: (0, 0)))

    kern = functools.partial(_mm_kernel, has_bias=b is not None,
                             has_add=add_pad is not None, fuse_elu=fuse_elu,
                             compute_stats=compute_stats, n_valid=n_valid, tm=tm)
    sem = ("arbitrary",) if compute_stats else ("parallel",)
    out = pl.pallas_call(
        kern, grid=(Mp // tm,), in_specs=in_specs, out_specs=out_specs,
        out_shape=out_shape,
        compiler_params=pltpu.CompilerParams(dimension_semantics=sem),
    )(*args)
    if compute_stats:
        return out[0], (out[1], out[2])
    return out[0]


# ----------------------- GMM gaussian message kernel -------------------------

def _gmm_msg_kernel(ea_ref, mu_ref, ivar_ref, xj_ref, o_ref, *, K, M, D, n_valid, te):
    ea = ea_ref[...]                                           # (te, D) f32
    acc = jnp.zeros(o_ref.shape, jnp.float32)                  # (te, M)
    for k in range(K):
        diff = ea - mu_ref[k:k + 1, :]                         # (te, D)
        q = diff * diff * ivar_ref[k:k + 1, :]                 # ivar = -0.5/(eps+sigma^2)
        expo = q[:, 0:1]
        for d in range(1, D):                                  # explicit adds, no XLU reduce
            expo = expo + q[:, d:d + 1]
        # static lane slice of the (te, K*M) bf16 stream -> no (K,E,M) transpose
        acc = acc + jnp.exp(expo) * xj_ref[:, k * M:(k + 1) * M].astype(jnp.float32)
    # zero padded edges so the downstream scatter stays correct
    erow = pl.program_id(0) * te + jax.lax.broadcasted_iota(jnp.int32, (te, 1), 0)
    emask = (erow < n_valid).astype(jnp.float32)
    o_ref[...] = acc * emask


def gmm_message(ea_pad, mu, sigma, xj_pad, n_valid_edges, te):
    Ep, KM = xj_pad.shape
    K, D = mu.shape
    M = KM // K
    inv_var = (-0.5 / (EPS_GMM + sigma * sigma)).astype(jnp.float32)   # (K, D), hoisted
    kern = functools.partial(_gmm_msg_kernel, K=K, M=M, D=D,
                             n_valid=n_valid_edges, te=te)
    return pl.pallas_call(
        kern, grid=(Ep // te,),
        in_specs=[pl.BlockSpec((te, D), lambda i: (i, 0)),
                  pl.BlockSpec((K, D), lambda i: (0, 0)),
                  pl.BlockSpec((K, D), lambda i: (0, 0)),
                  pl.BlockSpec((te, KM), lambda i: (i, 0))],
        out_specs=pl.BlockSpec((te, M), lambda i: (i, 0)),
        out_shape=jax.ShapeDtypeStruct((Ep, M), jnp.float32),
        compiler_params=pltpu.CompilerParams(dimension_semantics=("parallel",)),
    )(ea_pad, mu.astype(jnp.float32), inv_var, xj_pad)


# ------------------- BatchNorm apply (+residual add +ELU) --------------------

def _bn_apply_kernel(*refs, has_add, fuse_elu):
    x_ref, scale_ref, shift_ref = refs[0], refs[1], refs[2]
    idx = 3
    a_ref = None
    if has_add:
        a_ref = refs[idx]; idx += 1
    o_ref = refs[idx]
    y = x_ref[...].astype(jnp.float32) * scale_ref[...] + shift_ref[...]
    if has_add:
        y = y + a_ref[...].astype(jnp.float32)
    if fuse_elu:
        y = jnp.where(y > 0, y, jnp.expm1(y))
    o_ref[...] = y.astype(o_ref.dtype)


def bn_apply(x_pad, gamma, beta, stats, n_valid, add_pad=None, fuse_elu=False, tr=256):
    """Training-mode BatchNorm1d using stats (sum, sumsq) fused into the producer;
    optionally fused with a residual add and ELU.  bf16 in / bf16 out."""
    Mp, C = x_pad.shape
    assert Mp % tr == 0
    s, sq = stats
    mean = s / float(n_valid)
    var = sq / float(n_valid) - mean * mean           # biased variance (training BN)
    scale = gamma.reshape(1, C).astype(jnp.float32) * jax.lax.rsqrt(var + EPS_BN)
    shift = beta.reshape(1, C).astype(jnp.float32) - mean * scale

    args = [x_pad, scale, shift]
    in_specs = [pl.BlockSpec((tr, C), lambda i: (i, 0)),
                pl.BlockSpec((1, C), lambda i: (0, 0)),
                pl.BlockSpec((1, C), lambda i: (0, 0))]
    if add_pad is not None:
        args.append(add_pad)
        in_specs.append(pl.BlockSpec((tr, C), lambda i: (i, 0)))

    kern = functools.partial(_bn_apply_kernel, has_add=add_pad is not None,
                             fuse_elu=fuse_elu)
    return pl.pallas_call(
        kern, grid=(Mp // tr,), in_specs=in_specs,
        out_specs=pl.BlockSpec((tr, C), lambda i: (i, 0)),
        out_shape=jax.ShapeDtypeStruct((Mp, C), jnp.bfloat16),
        compiler_params=pltpu.CompilerParams(dimension_semantics=("parallel",)),
    )(*args)


# ----------------------------- log_softmax -----------------------------------

def _log_softmax_kernel(x_ref, o_ref):
    x = x_ref[...]
    m = jnp.max(x, axis=1, keepdims=True)
    z = x - m
    o_ref[...] = z - jnp.log(jnp.sum(jnp.exp(z), axis=1, keepdims=True))


def log_softmax(x):
    x = x.astype(jnp.float32)
    return pl.pallas_call(
        _log_softmax_kernel, grid=(1,),
        in_specs=[pl.BlockSpec(x.shape, lambda i: (0, 0))],
        out_specs=pl.BlockSpec(x.shape, lambda i: (0, 0)),
        out_shape=jax.ShapeDtypeStruct(x.shape, jnp.float32),
    )(x)


# ------------------------- graph preprocessing -------------------------------

def preprocess_graph(x, edge_index, edge_attr, row_tile=256, edge_tile=512):
    """Pad once per branch; hoist degree computation (reused by all 7 convs)."""
    N, C = x.shape
    E = edge_attr.shape[0]
    rt = min(row_tile, _round_up(N, 16))
    Mp = _round_up(N, rt)
    et = min(edge_tile, _round_up(E, 16))
    Ep = _round_up(E, et)

    Cp = max(C, 128)                                   # input feature dim only
    x_pad = _pad2(x.astype(jnp.float32), Mp, Cp).astype(jnp.bfloat16)
    src = jnp.pad(edge_index[0].astype(jnp.int32), (0, Ep - E))
    dst = jnp.pad(edge_index[1].astype(jnp.int32), (0, Ep - E))   # padded msgs are zeroed
    ea = _pad2(edge_attr.astype(jnp.float32), Ep, edge_attr.shape[1])

    cnt = jax.ops.segment_sum(jnp.ones((E,), jnp.float32),
                              edge_index[1].astype(jnp.int32), num_segments=Mp)
    inv_deg = 1.0 / jnp.maximum(cnt, 1.0)

    return dict(x=x_pad, src=src, dst=dst, ea=ea, inv_deg=inv_deg,
                n_nodes=N, n_edges=E, row_tile=rt, edge_tile=et)


# ------------------------- GMMConv / blocks / net ----------------------------

def gmm_conv(x_pad, graph, p, compute_stats=True):
    """torch_geometric GMMConv (mean aggr, root weight, bias), pre-BN output.
    Returns (y_pad_bf16, (col_sum, col_sumsq)) when compute_stats."""
    Mp = x_pad.shape[0]
    M = p['root'].shape[1]
    rt, et = graph['row_tile'], graph['edge_tile']

    xg = matmul_fused(x_pad, p['g'], graph['n_nodes'], tm=rt)          # (Mp, K*M) bf16

    # TODO(synk): fuse this gather into the message kernel (scalar-prefetch /
    # make_async_copy DMA gather) so the (Ep, K*M) intermediate never hits HBM.
    xj = jnp.take(xg, graph['src'], axis=0)                            # (Ep, K*M) bf16

    msg = gmm_message(graph['ea'], p['mu'], p['sigma'], xj,
                      graph['n_edges'], et)                            # (Ep, M) f32

    # TODO(synk): replace with a Pallas sorted segment-reduce fused into the
    # root-matmul epilogue (XLA scatter is slow on TPU).
    agg = jax.ops.segment_sum(msg, graph['dst'], num_segments=Mp)      # (Mp, M) f32
    agg = (agg * graph['inv_deg'][:, None]).astype(jnp.bfloat16)       # mean aggregation

    # fused epilogue: agg + x @ root + bias (+ BN stats) in one tiled MXU pass
    return matmul_fused(x_pad, p['root'], graph['n_nodes'], b=p['bias'],
                        add_pad=agg, compute_stats=compute_stats, tm=rt)


def residual_block(x_pad, graph, p):
    n, rt = graph['n_nodes'], graph['row_tile']
    y1, st1 = gmm_conv(x_pad, graph, p['conv1'])
    h = bn_apply(y1, *p['bn1'], st1, n, fuse_elu=True, tr=rt)
    y2, st2 = gmm_conv(h, graph, p['conv2'])
    h = bn_apply(y2, *p['bn2'], st2, n, fuse_elu=False, tr=rt)
    ys, sts = gmm_conv(x_pad, graph, p['sc_conv'])
    # shortcut BN fused with residual add + ELU (one HBM pass instead of three)
    return bn_apply(ys, *p['sc_bn'], sts, n, add_pad=h, fuse_elu=True, tr=rt)


def net_forward(p, data_v, data_p):
    x_v, ei_v, ea_v, ptr_v = data_v
    x_p, ei_p, ea_p, ptr_p = data_p
    vidx_v = ptr_v[1:] - 1
    vidx_p = ptr_p[1:] - 1

    gv = preprocess_graph(x_v, ei_v, ea_v)
    gp = preprocess_graph(x_p, ei_p, ea_p)

    y, st = gmm_conv(gv['x'], gv, p['conv_v'])
    h_v = bn_apply(y, *p['bn_v'], st, gv['n_nodes'], fuse_elu=True, tr=gv['row_tile'])
    y, st = gmm_conv(gp['x'], gp, p['conv_p'])
    h_p = bn_apply(y, *p['bn_p'], st, gp['n_nodes'], fuse_elu=True, tr=gp['row_tile'])

    for name in ('block1', 'block2', 'block3'):
        h_v = residual_block(h_v, gv, p[name])
    for name in ('block4', 'block5', 'block6'):
        h_p = residual_block(h_p, gp, p[name])

    r_v = jnp.take(h_v, vidx_v, axis=0)                # (B, 512) virtual-node readout
    r_p = jnp.take(h_p, vidx_p, axis=0)                # (B, 512)
    h = jnp.concatenate([r_v, r_p], axis=1)            # (B, 1024) bf16

    B = r_v.shape[0]
    Bp = _round_up(B, 16)
    h = _pad2(h, Bp, h.shape[1])

    y, st = matmul_fused(h, p['fc1_w'], B, b=p['fc1_b'], fuse_elu=True,
                         compute_stats=True, tm=Bp)                    # fc1 + ELU + stats
    h = bn_apply(y, *p['bn'], st, B, fuse_elu=False, tr=Bp)
    # TODO(synk): nn.Dropout() left as identity (eval-mode); training mask is stochastic.
    logits = matmul_fused(h, p['fc2_w'], B, b=p['fc2_b'], tm=Bp)       # (Bp, 300)
    return log_softmax(logits[:B])


# ----------------------------- parameter init --------------------------------

def init_gmm(key, cin, cout, dim=3, K=5, cin_pad=None):
    cin_pad = cin if cin_pad is None else cin_pad
    k1, k2, k3, k4 = jax.random.split(key, 4)
    g = jax.random.normal(k1, (cin, cout * K), jnp.float32) / jnp.sqrt(float(cin * K))
    root = jax.random.normal(k4, (cin, cout), jnp.float32) / jnp.sqrt(float(cin))
    if cin_pad > cin:                       # pre-pad once at init (zero rows are exact)
        g = jnp.pad(g, ((0, cin_pad - cin), (0, 0)))
        root = jnp.pad(root, ((0, cin_pad - cin), (0, 0)))
    return dict(
        g=g.astype(jnp.bfloat16),           # pre-cast to bf16 once
        mu=jax.random.uniform(k2, (K, dim), jnp.float32, -1.0, 1.0),
        sigma=jax.random.uniform(k3, (K, dim), jnp.float32, 0.5, 1.5),
        root=root.astype(jnp.bfloat16),
        bias=jnp.zeros((cout,), jnp.float32),
    )


def init_bn(key, c):
    k1, k2 = jax.random.split(key)
    gamma = 1.0 + 0.1 * jax.random.normal(k1, (c,), jnp.float32)
    beta = 0.1 * jax.random.normal(k2, (c,), jnp.float32)
    return (gamma, beta)


def init_block(key, cin, cout):
    ks = jax.random.split(key, 6)
    return dict(
        conv1=init_gmm(ks[0], cin, cout, K=5),
        bn1=init_bn(ks[1], cout),
        conv2=init_gmm(ks[2], cout, cout, K=5),
        bn2=init_bn(ks[3], cout),
        sc_conv=init_gmm(ks[4], cin, cout, K=1),
        sc_bn=init_bn(ks[5], cout),
    )


def init_net(key):
    ks = jax.random.split(key, 13)
    p = {}
    p['conv_v'] = init_gmm(ks[0], 16, 64, cin_pad=128)   # input features padded to 128
    p['bn_v'] = init_bn(ks[1], 64)
    p['conv_p'] = init_gmm(ks[2], 1, 64, cin_pad=128)
    p['bn_p'] = init_bn(ks[3], 64)
    p['block1'] = init_block(ks[4], 64, 128)
    p['block2'] = init_block(ks[5], 128, 256)
    p['block3'] = init_block(ks[6], 256, 512)
    p['block4'] = init_block(ks[7], 64, 128)
    p['block5'] = init_block(ks[8], 128, 256)
    p['block6'] = init_block(ks[9], 256, 512)
    p['fc1_w'] = (jax.random.normal(ks[10], (1024, 512), jnp.float32)
                  / jnp.sqrt(1024.0)).astype(jnp.bfloat16)
    p['fc1_b'] = jnp.zeros((512,), jnp.float32)
    p['bn'] = init_bn(ks[11], 512)
    p['fc2_w'] = (jax.random.normal(ks[12], (512, 300), jnp.float32)
                  / jnp.sqrt(512.0)).astype(jnp.bfloat16)
    p['fc2_b'] = jnp.zeros((300,), jnp.float32)
    return p


# ----------------------------------- main ------------------------------------

if __name__ == "__main__":
    key = jax.random.PRNGKey(0)
    kparams, kdata = jax.random.split(key)
    params = init_net(kparams)

    kv1, kv2, kv3, kp1, kp2, kp3 = jax.random.split(kdata, 6)
    B = 2          # graphs per batch
    N = 8          # nodes total (4 per graph, last node of each graph = virtual node)
    E = 16         # edges total

    # virtual-molecule branch: 16-dim node features
    x_v = jax.random.normal(kv1, (N, 16), jnp.float32)
    ei_v = jax.random.randint(kv2, (2, E), 0, N, dtype=jnp.int32)
    ea_v = jax.random.uniform(kv3, (E, 3), jnp.float32)
    ptr_v = jnp.array([0, 4, 8], jnp.int32)

    # protein branch: 1-dim node features
    x_p = jax.random.normal(kp1, (N, 1), jnp.float32)
    ei_p = jax.random.randint(kp2, (2, E), 0, N, dtype=jnp.int32)
    ea_p = jax.random.uniform(kp3, (E, 3), jnp.float32)
    ptr_p = jnp.array([0, 4, 8], jnp.int32)

    out = net_forward(params,
                      (x_v, ei_v, ea_v, ptr_v),
                      (x_p, ei_p, ea_p, ptr_p))
    out = jax.block_until_ready(out)

    assert out.shape == (B, 300), out.shape
    # rows of log_softmax must exponentiate-sum to 1
    row_sums = jnp.exp(out).sum(axis=1)
    assert bool(jnp.all(jnp.abs(row_sums - 1.0) < 1e-3)), row_sums
    print("KERNEL_OK")
</pallas_src>

<mosaic_0001>
module attributes {stable_mosaic.version = 11 : i64} {
  func.func @_mm_kernel(%arg0: i32, %arg1: memref<16x128xbf16, #tpu.memory_space<vmem>>, %arg2: memref<128x320xbf16, #tpu.memory_space<vmem>>, %arg3: memref<16x320xbf16, #tpu.memory_space<vmem>>) attributes {dimension_semantics = [#tpu.dimension_semantics<parallel>], iteration_bounds = array<i64: 1>, scalar_prefetch = 0 : i64, scratch_operands = 0 : i64, tpu.core_type = #tpu.core_type<tc>, window_params = [{transform_indices = @transform_0, window_bounds = array<i64: 16, 128>}, {pipeline_mode = #tpu.pipeline_mode<synchronous>, transform_indices = @transform_1, window_bounds = array<i64: 128, 320>}, {transform_indices = @transform_2, window_bounds = array<i64: 16, 320>}]} {
    %c0 = arith.constant 0 : index
    %c0_0 = arith.constant 0 : index
    %0 = vector.load %arg1[%c0, %c0_0] : memref<16x128xbf16, #tpu.memory_space<vmem>>, vector<16x128xbf16>
    %c0_1 = arith.constant 0 : index
    %c0_2 = arith.constant 0 : index
    %1 = vector.load %arg2[%c0_1, %c0_2] : memref<128x320xbf16, #tpu.memory_space<vmem>>, vector<128x320xbf16>
    %cst = arith.constant dense<0.000000e+00> : vector<16x320xf32>
    %2 = tpu.matmul %0, %1, %cst {dimension_numbers = #tpu.dot_dimension_numbers<[1], [0], [0], [1], [0, 0, 1, 1], [], []>} : vector<16x128xbf16>, vector<128x320xbf16>, vector<16x320xf32> -> vector<16x320xf32>
    %3 = arith.truncf %2 : vector<16x320xf32> to vector<16x320xbf16>
    %c0_3 = arith.constant 0 : index
    %c0_4 = arith.constant 0 : index
    %4 = vector.load %arg3[%c0_3, %c0_4] : memref<16x320xbf16, #tpu.memory_space<vmem>>, vector<16x320xbf16>
    tpu.vector_store %arg3[%c0_3, %c0_4], %3 {strides = array<i32>} : memref<16x320xbf16, #tpu.memory_space<vmem>>, vector<16x320xbf16>,
    return
  }
  func.func @transform_0(%arg0: i32) -> (i32, i32) {
    %c0_i32 = arith.constant 0 : i32
    %c0_i32_0 = arith.constant 0 : i32
    return %arg0, %c0_i32 : i32, i32
  }
  func.func @transform_1(%arg0: i32) -> (i32, i32) {
    %c0_i32 = arith.constant 0 : i32
    %c0_i32_0 = arith.constant 0 : i32
    %c0_i32_1 = arith.constant 0 : i32
    return %c0_i32, %c0_i32_0 : i32, i32
  }
  func.func @transform_2(%arg0: i32) -> (i32, i32) {
    %c0_i32 = arith.constant 0 : i32
    %c0_i32_0 = arith.constant 0 : i32
    return %arg0, %c0_i32 : i32, i32
  }
}

</mosaic_0001>

<llo_original>
// kernel: tpu_custom_call.1
$region0: #{tpu_custom_call.1}
  #allocation0 [shape = 'u32[]', space=smem, size = 0x4, offset = 0x4, fixed_abs, tag = 'smem constant byte address 0x4 - core index']
  #allocation1 [shape = 'u32[144,128]{1,0:T(1,128)}', space=vmem, size = 0x12000, scoped, tag = 'internal scratch']
  %s0 = inlined_call_operand.vmem [shape: bf16[16,128], index: 0, kind: input, shape index: {}]
  %s1 = inlined_call_operand.vmem [shape: bf16[128,320], index: 1, kind: input, shape index: {}]
  %s2 = inlined_call_operand.hbm [shape: bf16[16,320], index: 2, kind: output, shape index: {}]
  %s3 = sld [smem:[#allocation0]]
  $region18: #{tpu_custom_call.1} parent=0
    _
  %s5 = ssub.s32 1, %s3
  %s6 = scalar_select 0, %s5, %s3
  $region1: #{tpu_custom_call.1} parent=0
    #allocation2 [shape = 'u8[12288]{0}', space=vmem, size = 0x3000, scoped, tag = 'output window, operand 0, single buffered']
    #allocation3 [shape = 's32[1]{0}', space=sflag, size = 0x4, scoped, tag = 'scoped memory for tpu_custom_call.1']
    %7 = vsyncpa [#allocation3], 0
    // Predicated region
    $region2: #{tpu_custom_call.1} parent=1 // pred_check
      _
    $region3: #{tpu_custom_call.1} parent=1 // pred_check_branch
      %9 = sbr.rel (0) target = $region5
    $region4: #{tpu_custom_call.1} parent=1 // pred_region
      _
    $region5: #{tpu_custom_call.1} parent=1 // pred_fallthru
      _
    // Predicated region
    $region6: #{tpu_custom_call.1} parent=1 // pred_check
      _
    $region7: #{tpu_custom_call.1} parent=1 // pred_check_branch
      %11 = sbr.rel (0) target = $region9
    $region8: #{tpu_custom_call.1} parent=1 // pred_region
      _
    $region9: #{tpu_custom_call.1} parent=1 // pred_fallthru
      _
    %v13 = vld [vmem:[%s0] sm:$0xf]
    %v14 = vld [vmem:[%s0 + $0x4] sm:$0xf]
    %v15 = vld [vmem:[%s1] sm:$0xff]
    %v16 = vld [vmem:[%s1 + $0x8] sm:$0xf]
    %v17 = vld [vmem:[%s1 + $0xc] sm:$0xff]
    %v18 = vld [vmem:[%s1 + $0x14] sm:$0xf]
    %v19 = vld [vmem:[%s1 + $0x18] sm:$0xff]
    %v20 = vld [vmem:[%s1 + $0x20] sm:$0xf]
    %v21 = vld [vmem:[%s1 + $0x24] sm:$0xff]
    %v22 = vld [vmem:[%s1 + $0x2c] sm:$0xf]
    %v23 = vld [vmem:[%s1 + $0x30] sm:$0xff]
    %v24 = vld [vmem:[%s1 + $0x38] sm:$0xf]
    %v25 = vld [vmem:[%s1 + $0x3c] sm:$0xff]
    %v26 = vld [vmem:[%s1 + $0x44] sm:$0xf]
    %v27 = vld [vmem:[%s1 + $0x48] sm:$0xff]
    %v28 = vld [vmem:[%s1 + $0x50] sm:$0xf]
    %v29 = vld [vmem:[%s1 + $0x54] sm:$0xff]
    %v30 = vld [vmem:[%s1 + $0x5c] sm:$0xf]
    %v31 = vld [vmem:[%s1 + $0x60] sm:$0xff]
    %v32 = vld [vmem:[%s1 + $0x68] sm:$0xf]
    %v33 = vld [vmem:[%s1 + $0x6c] sm:$0xff]
    %v34 = vld [vmem:[%s1 + $0x74] sm:$0xf]
    %v35 = vld [vmem:[%s1 + $0x78] sm:$0xff]
    %v36 = vld [vmem:[%s1 + $0x80] sm:$0xf]
    %v37 = vld [vmem:[%s1 + $0x84] sm:$0xff]
    %v38 = vld [vmem:[%s1 + $0x8c] sm:$0xf]
    %v39 = vld [vmem:[%s1 + $0x90] sm:$0xff]
    %v40 = vld [vmem:[%s1 + $0x98] sm:$0xf]
    %v41 = vld [vmem:[%s1 + $0x9c] sm:$0xff]
    %v42 = vld [vmem:[%s1 + $0xa4] sm:$0xf]
    %v43 = vld [vmem:[%s1 + $0xa8] sm:$0xff]
    %v44 = vld [vmem:[%s1 + $0xb0] sm:$0xf]
    %v45 = vld [vmem:[%s1 + $0xb4] sm:$0xff]
    %v46 = vld [vmem:[%s1 + $0xbc] sm:$0xf]
    %v49 = vunpack.c.l.b16 %v13
    %v50 = vunpack.c.l.b16 %v14
    %v51 = vpack.c.b16 %v50, %v49
    %v85 = vunpack.c.l.b16 %v15
    %v86 = vunpack.c.h.b16 %v15
    %v87 = vunpack.c.l.b16 %v16
    %v88 = vunpack.c.l.b16 %v17
    %v89 = vunpack.c.h.b16 %v17
    %v90 = vunpack.c.l.b16 %v18
    %v91 = vunpack.c.l.b16 %v19
    %v92 = vunpack.c.h.b16 %v19
    %v93 = vunpack.c.l.b16 %v20
    %v94 = vunpack.c.l.b16 %v21
    %v95 = vunpack.c.h.b16 %v21
    %v96 = vunpack.c.l.b16 %v22
    %v97 = vunpack.c.l.b16 %v23
    %v98 = vunpack.c.h.b16 %v23
    %v99 = vunpack.c.l.b16 %v24
    %v100 = vunpack.c.l.b16 %v25
    %v101 = vunpack.c.h.b16 %v25
    %v102 = vunpack.c.l.b16 %v26
    %v103 = vunpack.c.l.b16 %v27
    %v104 = vunpack.c.h.b16 %v27
    %v105 = vunpack.c.l.b16 %v28
    %v106 = vunpack.c.l.b16 %v29
    %v107 = vunpack.c.h.b16 %v29
    %v108 = vunpack.c.l.b16 %v30
    %v109 = vunpack.c.l.b16 %v31
    %v110 = vunpack.c.h.b16 %v31
    %v111 = vunpack.c.l.b16 %v32
    %v112 = vunpack.c.l.b16 %v33
    %v113 = vunpack.c.h.b16 %v33
    %v114 = vunpack.c.l.b16 %v34
    %v115 = vunpack.c.l.b16 %v35
    %v116 = vunpack.c.h.b16 %v35
    %v117 = vunpack.c.l.b16 %v36
    %v118 = vunpack.c.l.b16 %v37
    %v119 = vunpack.c.h.b16 %v37
    %v120 = vunpack.c.l.b16 %v38
    %v121 = vunpack.c.l.b16 %v39
    %v122 = vunpack.c.h.b16 %v39
    %v123 = vunpack.c.l.b16 %v40
    %v124 = vunpack.c.l.b16 %v41
    %v125 = vunpack.c.h.b16 %v41
    %v126 = vunpack.c.l.b16 %v42
    %v127 = vunpack.c.l.b16 %v43
    %v128 = vunpack.c.h.b16 %v43
    %v129 = vunpack.c.l.b16 %v44
    %v130 = vunpack.c.l.b16 %v45
    %v131 = vunpack.c.h.b16 %v45
    %v132 = vunpack.c.l.b16 %v46
    %v133 = vpack.c.b16 %v88, %v85
    %v134 = vpack.c.b16 %v89, %v86
    %v135 = vpack.c.b16 %v90, %v87
    %v136 = vpack.c.b16 %v94, %v91
    %v137 = vpack.c.b16 %v95, %v92
    %v138 = vpack.c.b16 %v96, %v93
    %v139 = vpack.c.b16 %v100, %v97
    %v140 = vpack.c.b16 %v101, %v98
    %v141 = vpack.c.b16 %v102, %v99
    %v142 = vpack.c.b16 %v106, %v103
    %v143 = vpack.c.b16 %v107, %v104
    %v144 = vpack.c.b16 %v108, %v105
    %v145 = vpack.c.b16 %v112, %v109
    %v146 = vpack.c.b16 %v113, %v110
    %v147 = vpack.c.b16 %v114, %v111
    %v148 = vpack.c.b16 %v118, %v115
    %v149 = vpack.c.b16 %v119, %v116
    %v150 = vpack.c.b16 %v120, %v117
    %v151 = vpack.c.b16 %v124, %v121
    %v152 = vpack.c.b16 %v125, %v122
    %v153 = vpack.c.b16 %v126, %v123
    %v154 = vpack.c.b16 %v130, %v127
    %v155 = vpack.c.b16 %v131, %v128
    %v156 = vpack.c.b16 %v132, %v129
    %181 = vmatprep.subr.bf16.mxu0 %v134
    %182 = vmatpush1.bf16.msra.mxu0 %v133
    %183 = vmatprep.subr.bf16.mxu0 %v137
    %184 = vmatpush1.bf16.msra.mxu0 %v136
    %185 = vmatprep.subr.bf16.mxu0 %v140
    %186 = vmatpush1.bf16.msra.mxu0 %v139
    %187 = vmatprep.subr.bf16.mxu0 %v143
    %188 = vmatpush1.bf16.msra.mxu0 %v142
    %189 = vmatprep.subr.bf16.mxu0 %v146
    %190 = vmatpush1.bf16.msra.mxu0 %v145
    %191 = vmatprep.subr.bf16.mxu0 %v149
    %192 = vmatpush1.bf16.msra.mxu0 %v148
    %193 = vmatprep.subr.bf16.mxu0 %v152
    %194 = vmatpush1.bf16.msra.mxu0 %v151
    %195 = vmatprep.subr.bf16.mxu0 %v155
    %196 = vmatpush1.bf16.msra.mxu0 %v154
    %197 = vmatprep.subr.bf16.mxu0 0
    %198 = vmatpush1.bf16.msra.mxu0 0
    %199 = vmatprep.subr.bf16.mxu0 0
    %200 = vmatpush1.bf16.msra.mxu0 0
    %201 = vmatprep.subr.bf16.mxu0 0
    %202 = vmatpush1.bf16.msra.mxu0 0
    %203 = vmatprep.subr.bf16.mxu0 0
    %204 = vmatpush1.bf16.msra.mxu0 0
    %205 = vmatprep.subr.bf16.mxu0 0
    %206 = vmatpush1.bf16.msra.mxu0 0
    %207 = vmatprep.subr.bf16.mxu0 0
    %208 = vmatpush1.bf16.msra.mxu0 0
    %209 = vmatprep.subr.bf16.mxu0 0
    %210 = vmatpush1.bf16.msra.mxu0 0
    %211 = vmatprep.subr.bf16.mxu0 0
    %212 = vmatpush1.bf16.msra.mxu0 0
    %213 = vmatprep.mubr.bf16.mxu0 0
    %214 = vmatmul.mubr.bf16.gmra.mrb[0].mxu0 %v51
    %v215 = vpop.f32.mrb[0].mxu0
    %v216 = vadd.f32 0.0, %v215
    %v217 = vpop.f32.mrb[0].mxu0
    %v218 = vadd.f32 0.0, %v217
    %v219 = vpop.f32.mrb[0].mxu0
    %v220 = vadd.f32 0.0, %v219
    %v221 = vpop.f32.mrb[0].mxu0
    %v222 = vadd.f32 0.0, %v221
    %223 = vdwg.mxu0
    %224 = vmatprep.subr.bf16.mxu0 0
    %225 = vmatpush1.bf16.msra.mxu0 %v135
    %226 = vmatprep.subr.bf16.mxu0 0
    %227 = vmatpush1.bf16.msra.mxu0 %v138
    %228 = vmatprep.subr.bf16.mxu0 0
    %229 = vmatpush1.bf16.msra.mxu0 %v141
    %230 = vmatprep.subr.bf16.mxu0 0
    %231 = vmatpush1.bf16.msra.mxu0 %v144
    %232 = vmatprep.subr.bf16.mxu0 0
    %233 = vmatpush1.bf16.msra.mxu0 %v147
    %234 = vmatprep.subr.bf16.mxu0 0
    %235 = vmatpush1.bf16.msra.mxu0 %v150
    %236 = vmatprep.subr.bf16.mxu0 0
    %237 = vmatpush1.bf16.msra.mxu0 %v153
    %238 = vmatprep.subr.bf16.mxu0 0
    %239 = vmatpush1.bf16.msra.mxu0 %v156
    %240 = vmatprep.subr.bf16.mxu0 0
    %241 = vmatpush1.bf16.msra.mxu0 0
    %242 = vmatprep.subr.bf16.mxu0 0
    %243 = vmatpush1.bf16.msra.mxu0 0
    %244 = vmatprep.subr.bf16.mxu0 0
    %245 = vmatpush1.bf16.msra.mxu0 0
    %246 = vmatprep.subr.bf16.mxu0 0
    %247 = vmatpush1.bf16.msra.mxu0 0
    %248 = vmatprep.subr.bf16.mxu0 0
    %249 = vmatpush1.bf16.msra.mxu0 0
    %250 = vmatprep.subr.bf16.mxu0 0
    %251 = vmatpush1.bf16.msra.mxu0 0
    %252 = vmatprep.subr.bf16.mxu0 0
    %253 = vmatpush1.bf16.msra.mxu0 0
    %254 = vmatprep.subr.bf16.mxu0 0
    %255 = vmatpush1.bf16.msra.mxu0 0
    %256 = vmatprep.mubr.bf16.mxu0 0
    %257 = vmatmul.mubr.bf16.gmra.mrb[0].mxu0 %v51
    %v258 = vpop.f32.mrb[0].mxu0
    %v259 = vadd.f32 0.0, %v258
    %v260 = vpop.f32.mrb[0].mxu0
    %v261 = vpop.f32.mrb[0].mxu0
    %v262 = vadd.f32 0.0, %v261
    %v263 = vpop.f32.mrb[0].mxu0
    %264 = vdwg.mxu0
    %v265 = vpack.c.bf16 %v220, %v216
    %v266 = vpack.c.bf16 %v222, %v218
    %v267 = vpack.c.bf16 %v262, %v259
    %v271 = vunpack.c.l.b16 %v265
    %v272 = vunpack.c.l.b16 %v266
    %v273 = vunpack.c.l.b16 %v267
    %v274 = vunpack.c.h.b16 %v265
    %v275 = vunpack.c.h.b16 %v266
    %v276 = vunpack.c.h.b16 %v267
    %v277 = vpack.c.b16 %v272, %v271
    %v278 = vpack.c.b16 %v273, %v273
    %v279 = vpack.c.b16 %v275, %v274
    %v280 = vpack.c.b16 %v276, %v276
    %285 = vst [vmem:[#allocation2] sm:$0xff] %v277
    %vm286 = vcmask 519168
    %287 = vst.msk [vmem:[#allocation2 + $0x8] sm:$0xf] %vm286, %v278
    %288 = vst [vmem:[#allocation2 + $0xc] sm:$0xff] %v279
    %289 = vst.msk [vmem:[#allocation2 + $0x14] sm:$0xf] %vm286, %v280
    // Predicated region
    $region10: #{tpu_custom_call.1} parent=1 // pred_check
      _
    $region11: #{tpu_custom_call.1} parent=1 // pred_check_branch
      %291 = sbr.rel (0) target = $region13
    $region12: #{tpu_custom_call.1} parent=1 // pred_region
      %s293 = ssub.s32 384, 384
      %294 = vsyncadd [#allocation3], %s293
      %s295 = sshll.u32 [#allocation2], 4
      %s296 = int_to_ptr.vmem [resolvable:$true] %s295
      %301 = dma.vmem_to_hbm [thread:$0]  %s296, 384, %s2, [#allocation3], 192, 192, 12
    $region13: #{tpu_custom_call.1} parent=1 // pred_fallthru
      _
    // Predicated region
    $region14: #{tpu_custom_call.1} parent=1 // pred_check
      _
    $region15: #{tpu_custom_call.1} parent=1 // pred_check_branch
      %303 = sbr.rel (0) target = $region17
    $region16: #{tpu_custom_call.1} parent=1 // pred_region
      %304 = dma.done [#allocation3], 384
    $region17: #{tpu_custom_call.1} parent=1 // pred_fallthru
      _
    %305 = vsyncpa [#allocation3], 1

</llo_original>
